<compile_context>
chip_gen: v5e
topology: v5e:2x2
jax: 0.10.0
libtpu: 0.0.40
codegen_flags: <defaults>
</compile_context>

<pallas_src>
import math

import jax
import jax.numpy as jnp
from jax import lax
from jax.experimental import pallas as pl
from jax.experimental.pallas import tpu as pltpu

EPS = 1e-5


def _telayernorm_kernel(x_ref, te_ref, gamma_ref, beta_ref, m_ref, o_ref):
    # x_ref:     (tile_m, L)   VMEM   lane-dense packed input rows
    # te_ref:    (tile_m, 1)   VMEM   per-row time-embed scalar (f32)
    # gamma_ref: (1, L)        VMEM   LayerNorm weight, tiled P times along lanes
    # beta_ref:  (1, L)        VMEM   LayerNorm bias,   tiled P times along lanes
    # m_ref:     (L, L)        VMEM   block-averaging matrix M[i,j] = (i//C == j//C)/C
    # o_ref:     (tile_m, L)   VMEM
    xf = x_ref[...].astype(jnp.float32)                                   # (tile_m, L)
    m = m_ref[...]                                                        # (L, L)

    # Per-channel-group mean / E[x^2], computed AND broadcast back to lanes in a single
    # MXU matmul each (the MXU is otherwise idle; keeps the VPU free -> HBM-bound).
    mean_b = jnp.dot(xf, m, preferred_element_type=jnp.float32)           # (tile_m, L)
    ex2_b = jnp.dot(xf * xf, m, preferred_element_type=jnp.float32)       # (tile_m, L)

    # Single-pass variance; clamp against tiny negative values from rounding.
    var = jnp.maximum(ex2_b - mean_b * mean_b, 0.0)
    inv = lax.rsqrt(var + EPS)                                            # EUP (free slot)

    gamma = gamma_ref[...]                                                # (1, L) f32
    beta = beta_ref[...]                                                  # (1, L) f32
    te = te_ref[...]                                                      # (tile_m, 1) f32

    ln = (xf - mean_b) * (inv * gamma) + beta
    # out = ln(x) * x * te
    o_ref[...] = (ln * (xf * te)).astype(o_ref.dtype)


def time_efficient_layernorm(x, gamma, beta, time_embed, *,
                             target_block_bytes=2 * 1024 * 1024):
    """x: (T, B, H, W, C); gamma/beta: (C,); time_embed: (T,)."""
    T, B, H, W, C = x.shape
    N = B * H * W
    orig_dtype = x.dtype

    # Lane-dense packing: fold P consecutive C-rows into one L-wide row, L % 128 == 0.
    P = 128 // math.gcd(C, 128)
    L = P * C
    R = pl.cdiv(N, P)            # packed rows per time step (pad N up if needed)
    N_pad = R * P
    Rtot = T * R                 # total packed rows across all time steps

    x3 = x.reshape(T, N, C)
    if N_pad != N:
        # Pad rows (zeros) so the kernel always sees the lane-dense L layout;
        # padded rows are sliced off after the call (stats are strictly per-row).
        x3 = jnp.pad(x3, ((0, 0), (0, N_pad - N), (0, 0)))
    x_flat = x3.reshape(Rtot, L)

    # Per-row time-embed column (tiny: 4 bytes per 4*L-byte row of HBM traffic).
    te_rows = jnp.repeat(time_embed.astype(jnp.float32), R).reshape(Rtot, 1)

    gamma_p = jnp.tile(gamma.astype(jnp.float32), P).reshape(1, L)
    beta_p = jnp.tile(beta.astype(jnp.float32), P).reshape(1, L)

    # Static block-averaging matrix: M[i, j] = (i // C == j // C) / C.
    grp = jnp.arange(L, dtype=jnp.int32) // C
    m_mat = (grp[:, None] == grp[None, :]).astype(jnp.float32) * (1.0 / C)  # (L, L)

    # Multi-MiB row tiles to amortize the ~0.35 us per-grid-step overhead; f32
    # intermediates + double-buffered I/O stay comfortably inside VMEM on all chips.
    rows_per_block = max(8, (target_block_bytes // (L * 4)) // 8 * 8)
    if Rtot <= rows_per_block:
        tile_m = Rtot            # single block (block dim == full dim is always legal)
    else:
        tile_m = rows_per_block
    grid = (pl.cdiv(Rtot, tile_m),)

    out_flat = pl.pallas_call(
        _telayernorm_kernel,
        out_shape=jax.ShapeDtypeStruct((Rtot, L), orig_dtype),
        grid_spec=pltpu.PrefetchScalarGridSpec(
            num_scalar_prefetch=0,
            grid=grid,
            in_specs=[
                pl.BlockSpec((tile_m, L), lambda i: (i, 0)),   # x
                pl.BlockSpec((tile_m, 1), lambda i: (i, 0)),   # per-row time embed
                pl.BlockSpec((1, L), lambda i: (0, 0)),        # gamma
                pl.BlockSpec((1, L), lambda i: (0, 0)),        # beta
                pl.BlockSpec((L, L), lambda i: (0, 0)),        # block-averaging matrix
            ],
            out_specs=pl.BlockSpec((tile_m, L), lambda i: (i, 0)),
        ),
        compiler_params=pltpu.CompilerParams(
            dimension_semantics=("parallel",),
            # ~2 MiB x/out/te blocks double-buffered + f32 temporaries ~= 20-30 MiB;
            # 40 MiB leaves headroom and is well under v7x's 64 MiB per-TC VMEM.
            vmem_limit_bytes=40 * 1024 * 1024,
        ),
    )(x_flat, te_rows, gamma_p, beta_p, m_mat)

    out = out_flat.reshape(T, N_pad, C)
    if N_pad != N:
        out = out[:, :N, :]
    return out.reshape(T, B, H, W, C)


def _reference(x, gamma, beta, time_embed):
    xf = x.astype(jnp.float32)
    mean = jnp.mean(xf, axis=-1, keepdims=True)
    var = jnp.mean((xf - mean) ** 2, axis=-1, keepdims=True)
    ln = (xf - mean) / jnp.sqrt(var + EPS) * gamma + beta
    te = time_embed.reshape((-1,) + (1,) * (x.ndim - 1))
    return (ln * xf * te).astype(x.dtype)


if __name__ == "__main__":
    # Small shapes consistent with the module: out_plane=C=32, time_step=T=4.
    T, B, H, W, C = 4, 2, 8, 8, 32

    key = jax.random.PRNGKey(0)
    kx, kg, kb = jax.random.split(key, 3)

    x = jax.random.normal(kx, (T, B, H, W, C), dtype=jnp.float32)
    # LayerNorm affine params (deterministic, non-trivial).
    gamma = 1.0 + 0.1 * jax.random.normal(kg, (C,), dtype=jnp.float32)
    beta = 0.1 * jax.random.normal(kb, (C,), dtype=jnp.float32)
    # time_embed is initialized to ones in PyTorch; perturb deterministically so the
    # time-scaling path is exercised.
    time_embed = jnp.ones((T,), dtype=jnp.float32) + 0.05 * jnp.arange(T, dtype=jnp.float32)

    out = time_efficient_layernorm(x, gamma, beta, time_embed)
    out = jax.block_until_ready(out)

    ref = _reference(x, gamma, beta, time_embed)
    assert out.shape == (T, B, H, W, C)
    max_err = float(jnp.max(jnp.abs(out - ref)))
    assert jnp.allclose(out, ref, atol=1e-4, rtol=1e-4), max_err
    print("KERNEL_OK")
</pallas_src>

<mosaic_0001>
module attributes {stable_mosaic.version = 11 : i64} {
  func.func @_telayernorm_kernel(%arg0: i32, %arg1: memref<128x128xf32, #tpu.memory_space<vmem>>, %arg2: memref<128x1xf32, #tpu.memory_space<vmem>>, %arg3: memref<1x128xf32, #tpu.memory_space<vmem>>, %arg4: memref<1x128xf32, #tpu.memory_space<vmem>>, %arg5: memref<128x128xf32, #tpu.memory_space<vmem>>, %arg6: memref<128x128xf32, #tpu.memory_space<vmem>>) attributes {dimension_semantics = [#tpu.dimension_semantics<parallel>], iteration_bounds = array<i64: 1>, scalar_prefetch = 0 : i64, scratch_operands = 0 : i64, tpu.core_type = #tpu.core_type<tc>, window_params = [{transform_indices = @transform_0, window_bounds = array<i64: 128, 128>}, {transform_indices = @transform_1, window_bounds = array<i64: 128, 1>}, {pipeline_mode = #tpu.pipeline_mode<synchronous>, transform_indices = @transform_2, window_bounds = array<i64: 1, 128>}, {pipeline_mode = #tpu.pipeline_mode<synchronous>, transform_indices = @transform_3, window_bounds = array<i64: 1, 128>}, {pipeline_mode = #tpu.pipeline_mode<synchronous>, transform_indices = @transform_4, window_bounds = array<i64: 128, 128>}, {transform_indices = @transform_5, window_bounds = array<i64: 128, 128>}]} {
    %c0 = arith.constant 0 : index
    %c0_0 = arith.constant 0 : index
    %0 = vector.load %arg1[%c0, %c0_0] : memref<128x128xf32, #tpu.memory_space<vmem>>, vector<128x128xf32>
    %c0_1 = arith.constant 0 : index
    %c0_2 = arith.constant 0 : index
    %1 = vector.load %arg5[%c0_1, %c0_2] : memref<128x128xf32, #tpu.memory_space<vmem>>, vector<128x128xf32>
    %cst = arith.constant dense<0.000000e+00> : vector<128x128xf32>
    %2 = tpu.matmul %0, %1, %cst {dimension_numbers = #tpu.dot_dimension_numbers<[1], [0], [0], [1], [0, 0, 1, 1], [], []>} : vector<128x128xf32>, vector<128x128xf32>, vector<128x128xf32> -> vector<128x128xf32>
    %3 = arith.mulf %0, %0 : vector<128x128xf32>
    %cst_3 = arith.constant dense<0.000000e+00> : vector<128x128xf32>
    %4 = tpu.matmul %3, %1, %cst_3 {dimension_numbers = #tpu.dot_dimension_numbers<[1], [0], [0], [1], [0, 0, 1, 1], [], []>} : vector<128x128xf32>, vector<128x128xf32>, vector<128x128xf32> -> vector<128x128xf32>
    %5 = arith.mulf %2, %2 : vector<128x128xf32>
    %6 = arith.subf %4, %5 : vector<128x128xf32>
    %cst_4 = arith.constant 0.000000e+00 : f32
    %7 = vector.broadcast %cst_4 : f32 to vector<128x128xf32>
    %8 = arith.maximumf %6, %7 : vector<128x128xf32>
    %cst_5 = arith.constant 9.99999974E-6 : f32
    %9 = vector.broadcast %cst_5 : f32 to vector<128x128xf32>
    %10 = arith.addf %8, %9 : vector<128x128xf32>
    %11 = math.rsqrt %10 : vector<128x128xf32>
    %c0_6 = arith.constant 0 : index
    %c0_7 = arith.constant 0 : index
    %12 = vector.load %arg3[%c0_6, %c0_7] : memref<1x128xf32, #tpu.memory_space<vmem>>, vector<1x128xf32>
    %c0_8 = arith.constant 0 : index
    %c0_9 = arith.constant 0 : index
    %13 = vector.load %arg4[%c0_8, %c0_9] : memref<1x128xf32, #tpu.memory_space<vmem>>, vector<1x128xf32>
    %c0_10 = arith.constant 0 : index
    %c0_11 = arith.constant 0 : index
    %14 = vector.load %arg2[%c0_10, %c0_11] : memref<128x1xf32, #tpu.memory_space<vmem>>, vector<128x1xf32>
    %15 = arith.subf %0, %2 : vector<128x128xf32>
    %16 = vector.broadcast %12 : vector<1x128xf32> to vector<128x128xf32>
    %17 = arith.mulf %11, %16 : vector<128x128xf32>
    %18 = arith.mulf %15, %17 : vector<128x128xf32>
    %19 = vector.broadcast %13 : vector<1x128xf32> to vector<128x128xf32>
    %20 = arith.addf %18, %19 : vector<128x128xf32>
    %21 = vector.broadcast %14 : vector<128x1xf32> to vector<128x128xf32>
    %22 = arith.mulf %0, %21 : vector<128x128xf32>
    %23 = arith.mulf %20, %22 : vector<128x128xf32>
    %c0_12 = arith.constant 0 : index
    %c0_13 = arith.constant 0 : index
    %24 = vector.load %arg6[%c0_12, %c0_13] : memref<128x128xf32, #tpu.memory_space<vmem>>, vector<128x128xf32>
    tpu.vector_store %arg6[%c0_12, %c0_13], %23 {strides = array<i32>} : memref<128x128xf32, #tpu.memory_space<vmem>>, vector<128x128xf32>,
    return
  }
  func.func @transform_0(%arg0: i32) -> (i32, i32) {
    %c0_i32 = arith.constant 0 : i32
    %c0_i32_0 = arith.constant 0 : i32
    return %arg0, %c0_i32 : i32, i32
  }
  func.func @transform_1(%arg0: i32) -> (i32, i32) {
    %c0_i32 = arith.constant 0 : i32
    %c0_i32_0 = arith.constant 0 : i32
    return %arg0, %c0_i32 : i32, i32
  }
  func.func @transform_2(%arg0: i32) -> (i32, i32) {
    %c0_i32 = arith.constant 0 : i32
    %c0_i32_0 = arith.constant 0 : i32
    %c0_i32_1 = arith.constant 0 : i32
    return %c0_i32, %c0_i32_0 : i32, i32
  }
  func.func @transform_3(%arg0: i32) -> (i32, i32) {
    %c0_i32 = arith.constant 0 : i32
    %c0_i32_0 = arith.constant 0 : i32
    %c0_i32_1 = arith.constant 0 : i32
    return %c0_i32, %c0_i32_0 : i32, i32
  }
  func.func @transform_4(%arg0: i32) -> (i32, i32) {
    %c0_i32 = arith.constant 0 : i32
    %c0_i32_0 = arith.constant 0 : i32
    %c0_i32_1 = arith.constant 0 : i32
    return %c0_i32, %c0_i32_0 : i32, i32
  }
  func.func @transform_5(%arg0: i32) -> (i32, i32) {
    %c0_i32 = arith.constant 0 : i32
    %c0_i32_0 = arith.constant 0 : i32
    return %arg0, %c0_i32 : i32, i32
  }
}

</mosaic_0001>

<llo_original>
// kernel: tpu_custom_call.1
$region0: #{tpu_custom_call.1}
  #allocation0 [shape = 'u32[]', space=smem, size = 0x4, offset = 0x4, fixed_abs, tag = 'smem constant byte address 0x4 - core index']
  #allocation1 [shape = 'u32[72,128]{1,0:T(1,128)}', space=vmem, size = 0x9000, scoped, tag = 'internal scratch']
  %s0 = inlined_call_operand.vmem [shape: f32[128,128], index: 0, kind: input, shape index: {}]
  %s1 = inlined_call_operand.vmem [shape: f32[128,1], index: 1, kind: input, shape index: {}]
  %s2 = inlined_call_operand.vmem [shape: f32[1,128], index: 2, kind: input, shape index: {}]
  %s3 = inlined_call_operand.vmem [shape: f32[1,128], index: 3, kind: input, shape index: {}]
  %s4 = inlined_call_operand.hbm [shape: f32[128,128], index: 4, kind: input, shape index: {}]
  %s5 = inlined_call_operand.hbm [shape: f32[128,128], index: 5, kind: output, shape index: {}]
  %s6 = sld [smem:[#allocation0]]
  $region34: #{tpu_custom_call.1} parent=0
    _
  %s8 = ssub.s32 1, %s6
  %s9 = scalar_select 0, %s8, %s6
  $region1: #{tpu_custom_call.1} parent=0
    #allocation2 [shape = 'u8[65536]{0}', space=vmem, size = 0x10000, scoped, tag = 'input window, operand 4, single buffered']
    #allocation3 [shape = 's32[1]{0}', space=sflag, size = 0x4, scoped, tag = 'scoped memory for tpu_custom_call.1']
    #allocation4 [shape = 's32[1]{0}', space=sflag, size = 0x4, scoped, tag = 'scoped memory for tpu_custom_call.1']
    #allocation5 [shape = 'u8[65536]{0}', space=vmem, size = 0x10000, scoped, tag = 'output window, operand 0, single buffered']
    %10 = vsyncpa [#allocation3], 0
    %11 = vsyncpa [#allocation4], 0
    // Predicated region
    $region2: #{tpu_custom_call.1} parent=1 // pred_check
      _
    $region3: #{tpu_custom_call.1} parent=1 // pred_check_branch
      %13 = sbr.rel (0) target = $region5
    $region4: #{tpu_custom_call.1} parent=1 // pred_region
      _
    $region5: #{tpu_custom_call.1} parent=1 // pred_fallthru
      _
    // Predicated region
    $region6: #{tpu_custom_call.1} parent=1 // pred_check
      _
    $region7: #{tpu_custom_call.1} parent=1 // pred_check_branch
      %15 = sbr.rel (0) target = $region9
    $region8: #{tpu_custom_call.1} parent=1 // pred_region
      _
    $region9: #{tpu_custom_call.1} parent=1 // pred_fallthru
      _
    // Predicated region
    $region10: #{tpu_custom_call.1} parent=1 // pred_check
      _
    $region11: #{tpu_custom_call.1} parent=1 // pred_check_branch
      %17 = sbr.rel (0) target = $region13
    $region12: #{tpu_custom_call.1} parent=1 // pred_region
      _
    $region13: #{tpu_custom_call.1} parent=1 // pred_fallthru
      _
    // Predicated region
    $region14: #{tpu_custom_call.1} parent=1 // pred_check
      _
    $region15: #{tpu_custom_call.1} parent=1 // pred_check_branch
      %19 = sbr.rel (0) target = $region17
    $region16: #{tpu_custom_call.1} parent=1 // pred_region
      _
    $region17: #{tpu_custom_call.1} parent=1 // pred_fallthru
      _
    // Predicated region
    $region18: #{tpu_custom_call.1} parent=1 // pred_check
      _
    $region19: #{tpu_custom_call.1} parent=1 // pred_check_branch
      %21 = sbr.rel (0) target = $region21
    $region20: #{tpu_custom_call.1} parent=1 // pred_region
      %23 = vsyncadd [#allocation3], 0
      %s24 = sshll.u32 %s4, 4
      %s25 = int_to_ptr.hbm [resolvable:$true] %s24
      %s26 = sshll.u32 [#allocation2], 4
      %s27 = int_to_ptr.vmem [resolvable:$true] %s26
      %32 = dma.hbm_to_vmem [thread:$0]  %s25, 2048, %s27, [#allocation3], 128, 128, 8
    $region21: #{tpu_custom_call.1} parent=1 // pred_fallthru
      _
    // Predicated region
    $region22: #{tpu_custom_call.1} parent=1 // pred_check
      _
    $region23: #{tpu_custom_call.1} parent=1 // pred_check_branch
      %34 = sbr.rel (0) target = $region25
    $region24: #{tpu_custom_call.1} parent=1 // pred_region
      %36 = dma.done [#allocation3], 2048
    $region25: #{tpu_custom_call.1} parent=1 // pred_fallthru
      _
    %v37 = vld [vmem:[%s0] sm:$0xff]
    %v38 = vld [vmem:[%s0 + $0x8] sm:$0xff]
    %v39 = vld [vmem:[%s0 + $0x10] sm:$0xff]
    %v40 = vld [vmem:[%s0 + $0x18] sm:$0xff]
    %v41 = vld [vmem:[%s0 + $0x20] sm:$0xff]
    %v42 = vld [vmem:[%s0 + $0x28] sm:$0xff]
    %v43 = vld [vmem:[%s0 + $0x30] sm:$0xff]
    %v44 = vld [vmem:[%s0 + $0x38] sm:$0xff]
    %v45 = vld [vmem:[%s0 + $0x40] sm:$0xff]
    %v46 = vld [vmem:[%s0 + $0x48] sm:$0xff]
    %v47 = vld [vmem:[%s0 + $0x50] sm:$0xff]
    %v48 = vld [vmem:[%s0 + $0x58] sm:$0xff]
    %v49 = vld [vmem:[%s0 + $0x60] sm:$0xff]
    %v50 = vld [vmem:[%s0 + $0x68] sm:$0xff]
    %v51 = vld [vmem:[%s0 + $0x70] sm:$0xff]
    %v52 = vld [vmem:[%s0 + $0x78] sm:$0xff]
    %v53 = vld [vmem:[#allocation2] sm:$0xff]
    %v54 = vld [vmem:[#allocation2 + $0x8] sm:$0xff]
    %v55 = vld [vmem:[#allocation2 + $0x10] sm:$0xff]
    %v56 = vld [vmem:[#allocation2 + $0x18] sm:$0xff]
    %v57 = vld [vmem:[#allocation2 + $0x20] sm:$0xff]
    %v58 = vld [vmem:[#allocation2 + $0x28] sm:$0xff]
    %v59 = vld [vmem:[#allocation2 + $0x30] sm:$0xff]
    %v60 = vld [vmem:[#allocation2 + $0x38] sm:$0xff]
    %v61 = vld [vmem:[#allocation2 + $0x40] sm:$0xff]
    %v62 = vld [vmem:[#allocation2 + $0x48] sm:$0xff]
    %v63 = vld [vmem:[#allocation2 + $0x50] sm:$0xff]
    %v64 = vld [vmem:[#allocation2 + $0x58] sm:$0xff]
    %v65 = vld [vmem:[#allocation2 + $0x60] sm:$0xff]
    %v66 = vld [vmem:[#allocation2 + $0x68] sm:$0xff]
    %v67 = vld [vmem:[#allocation2 + $0x70] sm:$0xff]
    %v68 = vld [vmem:[#allocation2 + $0x78] sm:$0xff]
    %69 = vmatpush.msra.mxu0 %v68
    %70 = vmatpush.msra.mxu0 %v67
    %71 = vmatpush.msra.mxu0 %v66
    %72 = vmatpush.msra.mxu0 %v65
    %73 = vmatpush.msra.mxu0 %v64
    %74 = vmatpush.msra.mxu0 %v63
    %75 = vmatpush.msra.mxu0 %v62
    %76 = vmatpush.msra.mxu0 %v61
    %77 = vmatpush.msra.mxu0 %v60
    %78 = vmatpush.msra.mxu0 %v59
    %79 = vmatpush.msra.mxu0 %v58
    %80 = vmatpush.msra.mxu0 %v57
    %81 = vmatpush.msra.mxu0 %v56
    %82 = vmatpush.msra.mxu0 %v55
    %83 = vmatpush.msra.mxu0 %v54
    %84 = vmatpush.msra.mxu0 %v53
    %85 = vmatmul.f32.gmra.mxu0 %v37
    %v86 = vpop.f32.mrf.mxu0
    %v87 = vadd.f32 0.0, %v86
    %88 = vmatmul.f32.gmra.mxu0 %v38
    %v89 = vpop.f32.mrf.mxu0
    %v90 = vadd.f32 0.0, %v89
    %91 = vmatmul.f32.gmra.mxu0 %v39
    %v92 = vpop.f32.mrf.mxu0
    %v93 = vadd.f32 0.0, %v92
    %94 = vmatmul.f32.gmra.mxu0 %v40
    %v95 = vpop.f32.mrf.mxu0
    %v96 = vadd.f32 0.0, %v95
    %97 = vmatmul.f32.gmra.mxu0 %v41
    %v98 = vpop.f32.mrf.mxu0
    %v99 = vadd.f32 0.0, %v98
    %100 = vmatmul.f32.gmra.mxu0 %v42
    %v101 = vpop.f32.mrf.mxu0
    %v102 = vadd.f32 0.0, %v101
    %103 = vmatmul.f32.gmra.mxu0 %v43
    %v104 = vpop.f32.mrf.mxu0
    %v105 = vadd.f32 0.0, %v104
    %106 = vmatmul.f32.gmra.mxu0 %v44
    %v107 = vpop.f32.mrf.mxu0
    %v108 = vadd.f32 0.0, %v107
    %109 = vmatmul.f32.gmra.mxu0 %v45
    %v110 = vpop.f32.mrf.mxu0
    %v111 = vadd.f32 0.0, %v110
    %112 = vmatmul.f32.gmra.mxu0 %v46
    %v113 = vpop.f32.mrf.mxu0
    %v114 = vadd.f32 0.0, %v113
    %115 = vmatmul.f32.gmra.mxu0 %v47
    %v116 = vpop.f32.mrf.mxu0
    %v117 = vadd.f32 0.0, %v116
    %118 = vmatmul.f32.gmra.mxu0 %v48
    %v119 = vpop.f32.mrf.mxu0
    %v120 = vadd.f32 0.0, %v119
    %121 = vmatmul.f32.gmra.mxu0 %v49
    %v122 = vpop.f32.mrf.mxu0
    %v123 = vadd.f32 0.0, %v122
    %124 = vmatmul.f32.gmra.mxu0 %v50
    %v125 = vpop.f32.mrf.mxu0
    %v126 = vadd.f32 0.0, %v125
    %127 = vmatmul.f32.gmra.mxu0 %v51
    %v128 = vpop.f32.mrf.mxu0
    %v129 = vadd.f32 0.0, %v128
    %130 = vmatmul.f32.gmra.mxu0 %v52
    %v131 = vpop.f32.mrf.mxu0
    %v132 = vadd.f32 0.0, %v131
    %133 = vdwg.mxu0
    %v134 = vmul.f32 %v37, %v37
    %v135 = vmul.f32 %v38, %v38
    %v136 = vmul.f32 %v39, %v39
    %v137 = vmul.f32 %v40, %v40
    %v138 = vmul.f32 %v41, %v41
    %v139 = vmul.f32 %v42, %v42
    %v140 = vmul.f32 %v43, %v43
    %v141 = vmul.f32 %v44, %v44
    %v142 = vmul.f32 %v45, %v45
    %v143 = vmul.f32 %v46, %v46
    %v144 = vmul.f32 %v47, %v47
    %v145 = vmul.f32 %v48, %v48
    %v146 = vmul.f32 %v49, %v49
    %v147 = vmul.f32 %v50, %v50
    %v148 = vmul.f32 %v51, %v51
    %v149 = vmul.f32 %v52, %v52
    %150 = vmatpush.msra.mxu0 %v68
    %151 = vmatpush.msra.mxu0 %v67
    %152 = vmatpush.msra.mxu0 %v66
    %153 = vmatpush.msra.mxu0 %v65
    %154 = vmatpush.msra.mxu0 %v64
    %155 = vmatpush.msra.mxu0 %v63
    %156 = vmatpush.msra.mxu0 %v62
    %157 = vmatpush.msra.mxu0 %v61
    %158 = vmatpush.msra.mxu0 %v60
    %159 = vmatpush.msra.mxu0 %v59
    %160 = vmatpush.msra.mxu0 %v58
    %161 = vmatpush.msra.mxu0 %v57
    %162 = vmatpush.msra.mxu0 %v56
    %163 = vmatpush.msra.mxu0 %v55
    %164 = vmatpush.msra.mxu0 %v54
    %165 = vmatpush.msra.mxu0 %v53
    %166 = vmatmul.f32.gmra.mxu0 %v134
    %v167 = vpop.f32.mrf.mxu0
    %v168 = vadd.f32 0.0, %v167
    %169 = vmatmul.f32.gmra.mxu0 %v135
    %v170 = vpop.f32.mrf.mxu0
    %v171 = vadd.f32 0.0, %v170
    %172 = vmatmul.f32.gmra.mxu0 %v136
    %v173 = vpop.f32.mrf.mxu0
    %v174 = vadd.f32 0.0, %v173
    %175 = vmatmul.f32.gmra.mxu0 %v137
    %v176 = vpop.f32.mrf.mxu0
    %v177 = vadd.f32 0.0, %v176
    %178 = vmatmul.f32.gmra.mxu0 %v138
    %v179 = vpop.f32.mrf.mxu0
    %v180 = vadd.f32 0.0, %v179
    %181 = vmatmul.f32.gmra.mxu0 %v139
    %v182 = vpop.f32.mrf.mxu0
    %v183 = vadd.f32 0.0, %v182
    %184 = vmatmul.f32.gmra.mxu0 %v140
    %v185 = vpop.f32.mrf.mxu0
    %v186 = vadd.f32 0.0, %v185
    %187 = vmatmul.f32.gmra.mxu0 %v141
    %v188 = vpop.f32.mrf.mxu0
    %v189 = vadd.f32 0.0, %v188
    %190 = vmatmul.f32.gmra.mxu0 %v142
    %v191 = vpop.f32.mrf.mxu0
    %v192 = vadd.f32 0.0, %v191
    %193 = vmatmul.f32.gmra.mxu0 %v143
    %v194 = vpop.f32.mrf.mxu0
    %v195 = vadd.f32 0.0, %v194
    %196 = vmatmul.f32.gmra.mxu0 %v144
    %v197 = vpop.f32.mrf.mxu0
    %v198 = vadd.f32 0.0, %v197
    %199 = vmatmul.f32.gmra.mxu0 %v145
    %v200 = vpop.f32.mrf.mxu0
    %v201 = vadd.f32 0.0, %v200
    %202 = vmatmul.f32.gmra.mxu0 %v146
    %v203 = vpop.f32.mrf.mxu0
    %v204 = vadd.f32 0.0, %v203
    %205 = vmatmul.f32.gmra.mxu0 %v147
    %v206 = vpop.f32.mrf.mxu0
    %v207 = vadd.f32 0.0, %v206
    %208 = vmatmul.f32.gmra.mxu0 %v148
    %v209 = vpop.f32.mrf.mxu0
    %v210 = vadd.f32 0.0, %v209
    %211 = vmatmul.f32.gmra.mxu0 %v149
    %v212 = vpop.f32.mrf.mxu0
    %v213 = vadd.f32 0.0, %v212
    %214 = vdwg.mxu0
    %v215 = vmul.f32 %v87, %v87
    %v216 = vmul.f32 %v90, %v90
    %v217 = vmul.f32 %v93, %v93
    %v218 = vmul.f32 %v96, %v96
    %v219 = vmul.f32 %v99, %v99
    %v220 = vmul.f32 %v102, %v102
    %v221 = vmul.f32 %v105, %v105
    %v222 = vmul.f32 %v108, %v108
    %v223 = vmul.f32 %v111, %v111
    %v224 = vmul.f32 %v114, %v114
    %v225 = vmul.f32 %v117, %v117
    %v226 = vmul.f32 %v120, %v120
    %v227 = vmul.f32 %v123, %v123
    %v228 = vmul.f32 %v126, %v126
    %v229 = vmul.f32 %v129, %v129
    %v230 = vmul.f32 %v132, %v132
    %v231 = vsub.f32 %v168, %v215
    %v232 = vsub.f32 %v171, %v216
    %v233 = vsub.f32 %v174, %v217
    %v234 = vsub.f32 %v177, %v218
    %v235 = vsub.f32 %v180, %v219
    %v236 = vsub.f32 %v183, %v220
    %v237 = vsub.f32 %v186, %v221
    %v238 = vsub.f32 %v189, %v222
    %v239 = vsub.f32 %v192, %v223
    %v240 = vsub.f32 %v195, %v224
    %v241 = vsub.f32 %v198, %v225
    %v242 = vsub.f32 %v201, %v226
    %v243 = vsub.f32 %v204, %v227
    %v244 = vsub.f32 %v207, %v228
    %v245 = vsub.f32 %v210, %v229
    %v246 = vsub.f32 %v213, %v230
    %v247 = vmax.f32 %v231, 0.0
    %v248 = vmax.f32 %v232, 0.0
    %v249 = vmax.f32 %v233, 0.0
    %v250 = vmax.f32 %v234, 0.0
    %v251 = vmax.f32 %v235, 0.0
    %v252 = vmax.f32 %v236, 0.0
    %v253 = vmax.f32 %v237, 0.0
    %v254 = vmax.f32 %v238, 0.0
    %v255 = vmax.f32 %v239, 0.0
    %v256 = vmax.f32 %v240, 0.0
    %v257 = vmax.f32 %v241, 0.0
    %v258 = vmax.f32 %v242, 0.0
    %v259 = vmax.f32 %v243, 0.0
    %v260 = vmax.f32 %v244, 0.0
    %v261 = vmax.f32 %v245, 0.0
    %v262 = vmax.f32 %v246, 0.0
    %v263 = vadd.f32 %v247, 1e-05
    %v264 = vadd.f32 %v248, 1e-05
    %v265 = vadd.f32 %v249, 1e-05
    %v266 = vadd.f32 %v250, 1e-05
    %v267 = vadd.f32 %v251, 1e-05
    %v268 = vadd.f32 %v252, 1e-05
    %v269 = vadd.f32 %v253, 1e-05
    %v270 = vadd.f32 %v254, 1e-05
    %v271 = vadd.f32 %v255, 1e-05
    %v272 = vadd.f32 %v256, 1e-05
    %v273 = vadd.f32 %v257, 1e-05
    %v274 = vadd.f32 %v258, 1e-05
    %v275 = vadd.f32 %v259, 1e-05
    %v276 = vadd.f32 %v260, 1e-05
    %v277 = vadd.f32 %v261, 1e-05
    %v278 = vadd.f32 %v262, 1e-05
    %v279 = vrsqrt.pop %v263
    %v280 = vmul.f32 %v279, %v263
    %v281 = vmul.f32 %v280, %v279
    %v282 = vmul.f32 0.5, %v281
    %v283 = vsub.f32 1.5, %v282
    %v284 = vmul.f32 %v279, %v283
    %vm285 = vweird.f32 %v263
    %vm286 = vweird.f32 %v279
    %vm287 = vmor %vm285, %vm286
    %v288 = vsel %vm287, %v279, %v284
    %v289 = vrsqrt.pop %v264
    %v290 = vmul.f32 %v289, %v264
    %v291 = vmul.f32 %v290, %v289
    %v292 = vmul.f32 0.5, %v291
    %v293 = vsub.f32 1.5, %v292
    %v294 = vmul.f32 %v289, %v293
    %vm295 = vweird.f32 %v264
    %vm296 = vweird.f32 %v289
    %vm297 = vmor %vm295, %vm296
    %v298 = vsel %vm297, %v289, %v294
    %v299 = vrsqrt.pop %v265
    %v300 = vmul.f32 %v299, %v265
    %v301 = vmul.f32 %v300, %v299
    %v302 = vmul.f32 0.5, %v301
    %v303 = vsub.f32 1.5, %v302
    %v304 = vmul.f32 %v299, %v303
    %vm305 = vweird.f32 %v265
    %vm306 = vweird.f32 %v299
    %vm307 = vmor %vm305, %vm306
    %v308 = vsel %vm307, %v299, %v304
    %v309 = vrsqrt.pop %v266
    %v310 = vmul.f32 %v309, %v266
    %v311 = vmul.f32 %v310, %v309
    %v312 = vmul.f32 0.5, %v311
    %v313 = vsub.f32 1.5, %v312
    %v314 = vmul.f32 %v309, %v313
    %vm315 = vweird.f32 %v266
    %vm316 = vweird.f32 %v309
    %vm317 = vmor %vm315, %vm316
    %v318 = vsel %vm317, %v309, %v314
    %v319 = vrsqrt.pop %v267
    %v320 = vmul.f32 %v319, %v267
    %v321 = vmul.f32 %v320, %v319
    %v322 = vmul.f32 0.5, %v321
    %v323 = vsub.f32 1.5, %v322
    %v324 = vmul.f32 %v319, %v323
    %vm325 = vweird.f32 %v267
    %vm326 = vweird.f32 %v319
    %vm327 = vmor %vm325, %vm326
    %v328 = vsel %vm327, %v319, %v324
    %v329 = vrsqrt.pop %v268
    %v330 = vmul.f32 %v329, %v268
    %v331 = vmul.f32 %v330, %v329
    %v332 = vmul.f32 0.5, %v331
    %v333 = vsub.f32 1.5, %v332
    %v334 = vmul.f32 %v329, %v333
    %vm335 = vweird.f32 %v268
    %vm336 = vweird.f32 %v329
    %vm337 = vmor %vm335, %vm336
    %v338 = vsel %vm337, %v329, %v334
    %v339 = vrsqrt.pop %v269
    %v340 = vmul.f32 %v339, %v269
    %v341 = vmul.f32 %v340, %v339
    %v342 = vmul.f32 0.5, %v341
    %v343 = vsub.f32 1.5, %v342
    %v344 = vmul.f32 %v339, %v343
    %vm345 = vweird.f32 %v269
    %vm346 = vweird.f32 %v339
    %vm347 = vmor %vm345, %vm346
    %v348 = vsel %vm347, %v339, %v344
    %v349 = vrsqrt.pop %v270
    %v350 = vmul.f32 %v349, %v270
    %v351 = vmul.f32 %v350, %v349
    %v352 = vmul.f32 0.5, %v351
    %v353 = vsub.f32 1.5, %v352
    %v354 = vmul.f32 %v349, %v353
    %vm355 = vweird.f32 %v270
    %vm356 = vweird.f32 %v349
    %vm357 = vmor %vm355, %vm356
    %v358 = vsel %vm357, %v349, %v354
    %v359 = vrsqrt.pop %v271
    %v360 = vmul.f32 %v359, %v271
    %v361 = vmul.f32 %v360, %v359
    %v362 = vmul.f32 0.5, %v361
    %v363 = vsub.f32 1.5, %v362
    %v364 = vmul.f32 %v359, %v363
    %vm365 = vweird.f32 %v271
    %vm366 = vweird.f32 %v359
    %vm367 = vmor %vm365, %vm366
    %v368 = vsel %vm367, %v359, %v364
    %v369 = vrsqrt.pop %v272
    %v370 = vmul.f32 %v369, %v272
    %v371 = vmul.f32 %v370, %v369
    %v372 = vmul.f32 0.5, %v371
    %v373 = vsub.f32 1.5, %v372
    %v374 = vmul.f32 %v369, %v373
    %vm375 = vweird.f32 %v272
    %vm376 = vweird.f32 %v369
    %vm377 = vmor %vm375, %vm376
    %v378 = vsel %vm377, %v369, %v374
    %v379 = vrsqrt.pop %v273
    %v380 = vmul.f32 %v379, %v273
    %v381 = vmul.f32 %v380, %v379
    %v382 = vmul.f32 0.5, %v381
    %v383 = vsub.f32 1.5, %v382
    %v384 = vmul.f32 %v379, %v383
    %vm385 = vweird.f32 %v273
    %vm386 = vweird.f32 %v379
    %vm387 = vmor %vm385, %vm386
    %v388 = vsel %vm387, %v379, %v384
    %v389 = vrsqrt.pop %v274
    %v390 = vmul.f32 %v389, %v274
    %v391 = vmul.f32 %v390, %v389
    %v392 = vmul.f32 0.5, %v391
    %v393 = vsub.f32 1.5, %v392
    %v394 = vmul.f32 %v389, %v393
    %vm395 = vweird.f32 %v274
    %vm396 = vweird.f32 %v389
    %vm397 = vmor %vm395, %vm396
    %v398 = vsel %vm397, %v389, %v394
    %v399 = vrsqrt.pop %v275
    %v400 = vmul.f32 %v399, %v275
    %v401 = vmul.f32 %v400, %v399
    %v402 = vmul.f32 0.5, %v401
    %v403 = vsub.f32 1.5, %v402
    %v404 = vmul.f32 %v399, %v403
    %vm405 = vweird.f32 %v275
    %vm406 = vweird.f32 %v399
    %vm407 = vmor %vm405, %vm406
    %v408 = vsel %vm407, %v399, %v404
    %v409 = vrsqrt.pop %v276
    %v410 = vmul.f32 %v409, %v276
    %v411 = vmul.f32 %v410, %v409
    %v412 = vmul.f32 0.5, %v411
    %v413 = vsub.f32 1.5, %v412
    %v414 = vmul.f32 %v409, %v413
    %vm415 = vweird.f32 %v276
    %vm416 = vweird.f32 %v409
    %vm417 = vmor %vm415, %vm416
    %v418 = vsel %vm417, %v409, %v414
    %v419 = vrsqrt.pop %v277
    %v420 = vmul.f32 %v419, %v277
    %v421 = vmul.f32 %v420, %v419
    %v422 = vmul.f32 0.5, %v421
    %v423 = vsub.f32 1.5, %v422
    %v424 = vmul.f32 %v419, %v423
    %vm425 = vweird.f32 %v277
    %vm426 = vweird.f32 %v419
    %vm427 = vmor %vm425, %vm426
    %v428 = vsel %vm427, %v419, %v424
    %v429 = vrsqrt.pop %v278
    %v430 = vmul.f32 %v429, %v278
    %v431 = vmul.f32 %v430, %v429
    %v432 = vmul.f32 0.5, %v431
    %v433 = vsub.f32 1.5, %v432
    %v434 = vmul.f32 %v429, %v433
    %vm435 = vweird.f32 %v278
    %vm436 = vweird.f32 %v429
    %vm437 = vmor %vm435, %vm436
    %v438 = vsel %vm437, %v429, %v434
    %v439 = vld [vmem:[%s2] sm:$0x1]
    %v440 = vld [vmem:[%s3] sm:$0x1]
    %v441 = vld [vmem:[%s1] sm:$0xff]
    %v442 = vld [vmem:[%s1 + $0x8] sm:$0xff]
    %v443 = vld [vmem:[%s1 + $0x10] sm:$0xff]
    %v444 = vld [vmem:[%s1 + $0x18] sm:$0xff]
    %v445 = vld [vmem:[%s1 + $0x20] sm:$0xff]
    %v446 = vld [vmem:[%s1 + $0x28] sm:$0xff]
    %v447 = vld [vmem:[%s1 + $0x30] sm:$0xff]
    %v448 = vld [vmem:[%s1 + $0x38] sm:$0xff]
    %v449 = vld [vmem:[%s1 + $0x40] sm:$0xff]
    %v450 = vld [vmem:[%s1 + $0x48] sm:$0xff]
    %v451 = vld [vmem:[%s1 + $0x50] sm:$0xff]
    %v452 = vld [vmem:[%s1 + $0x58] sm:$0xff]
    %v453 = vld [vmem:[%s1 + $0x60] sm:$0xff]
    %v454 = vld [vmem:[%s1 + $0x68] sm:$0xff]
    %v455 = vld [vmem:[%s1 + $0x70] sm:$0xff]
    %v456 = vld [vmem:[%s1 + $0x78] sm:$0xff]
    %v457 = vsub.f32 %v37, %v87
    %v458 = vsub.f32 %v38, %v90
    %v459 = vsub.f32 %v39, %v93
    %v460 = vsub.f32 %v40, %v96
    %v461 = vsub.f32 %v41, %v99
    %v462 = vsub.f32 %v42, %v102
    %v463 = vsub.f32 %v43, %v105
    %v464 = vsub.f32 %v44, %v108
    %v465 = vsub.f32 %v45, %v111
    %v466 = vsub.f32 %v46, %v114
    %v467 = vsub.f32 %v47, %v117
    %v468 = vsub.f32 %v48, %v120
    %v469 = vsub.f32 %v49, %v123
    %v470 = vsub.f32 %v50, %v126
    %v471 = vsub.f32 %v51, %v129
    %v472 = vsub.f32 %v52, %v132
    %v474 = vperm.slane %v439, 0
    %v476 = vmul.f32 %v288, %v474
    %v477 = vmul.f32 %v298, %v474
    %v478 = vmul.f32 %v308, %v474
    %v479 = vmul.f32 %v318, %v474
    %v480 = vmul.f32 %v328, %v474
    %v481 = vmul.f32 %v338, %v474
    %v482 = vmul.f32 %v348, %v474
    %v483 = vmul.f32 %v358, %v474
    %v484 = vmul.f32 %v368, %v474
    %v485 = vmul.f32 %v378, %v474
    %v486 = vmul.f32 %v388, %v474
    %v487 = vmul.f32 %v398, %v474
    %v488 = vmul.f32 %v408, %v474
    %v489 = vmul.f32 %v418, %v474
    %v490 = vmul.f32 %v428, %v474
    %v491 = vmul.f32 %v438, %v474
    %v492 = vmul.f32 %v457, %v476
    %v493 = vmul.f32 %v458, %v477
    %v494 = vmul.f32 %v459, %v478
    %v495 = vmul.f32 %v460, %v479
    %v496 = vmul.f32 %v461, %v480
    %v497 = vmul.f32 %v462, %v481
    %v498 = vmul.f32 %v463, %v482
    %v499 = vmul.f32 %v464, %v483
    %v500 = vmul.f32 %v465, %v484
    %v501 = vmul.f32 %v466, %v485
    %v502 = vmul.f32 %v467, %v486
    %v503 = vmul.f32 %v468, %v487
    %v504 = vmul.f32 %v469, %v488
    %v505 = vmul.f32 %v470, %v489
    %v506 = vmul.f32 %v471, %v490
    %v507 = vmul.f32 %v472, %v491
    %v509 = vperm.slane %v440, 0
    %v511 = vadd.f32 %v492, %v509
    %v512 = vadd.f32 %v493, %v509
    %v513 = vadd.f32 %v494, %v509
    %v514 = vadd.f32 %v495, %v509
    %v515 = vadd.f32 %v496, %v509
    %v516 = vadd.f32 %v497, %v509
    %v517 = vadd.f32 %v498, %v509
    %v518 = vadd.f32 %v499, %v509
    %v519 = vadd.f32 %v500, %v509
    %v520 = vadd.f32 %v501, %v509
    %v521 = vadd.f32 %v502, %v509
    %v522 = vadd.f32 %v503, %v509
    %v523 = vadd.f32 %v504, %v509
    %v524 = vadd.f32 %v505, %v509
    %v525 = vadd.f32 %v506, %v509
    %v526 = vadd.f32 %v507, %v509
    %528 = vset.pattern.permute.xlu0 0
    %529 = vperm.xlu0 %528, %v441
    %v530 = vpop.permute.xlu0 %529
    %533 = vset.pattern.permute.xlu0 0
    %534 = vperm.xlu0 %533, %v442
    %v535 = vpop.permute.xlu0 %534
    %538 = vset.pattern.permute.xlu0 0
    %539 = vperm.xlu0 %538, %v443
    %v540 = vpop.permute.xlu0 %539
    %543 = vset.pattern.permute.xlu0 0
    %544 = vperm.xlu0 %543, %v444
    %v545 = vpop.permute.xlu0 %544
    %548 = vset.pattern.permute.xlu0 0
    %549 = vperm.xlu0 %548, %v445
    %v550 = vpop.permute.xlu0 %549
    %553 = vset.pattern.permute.xlu0 0
    %554 = vperm.xlu0 %553, %v446
    %v555 = vpop.permute.xlu0 %554
    %558 = vset.pattern.permute.xlu0 0
    %559 = vperm.xlu0 %558, %v447
    %v560 = vpop.permute.xlu0 %559
    %563 = vset.pattern.permute.xlu0 0
    %564 = vperm.xlu0 %563, %v448
    %v565 = vpop.permute.xlu0 %564
    %568 = vset.pattern.permute.xlu0 0
    %569 = vperm.xlu0 %568, %v449
    %v570 = vpop.permute.xlu0 %569
    %573 = vset.pattern.permute.xlu0 0
    %574 = vperm.xlu0 %573, %v450
    %v575 = vpop.permute.xlu0 %574
    %578 = vset.pattern.permute.xlu0 0
    %579 = vperm.xlu0 %578, %v451
    %v580 = vpop.permute.xlu0 %579
    %583 = vset.pattern.permute.xlu0 0
    %584 = vperm.xlu0 %583, %v452
    %v585 = vpop.permute.xlu0 %584
    %588 = vset.pattern.permute.xlu0 0
    %589 = vperm.xlu0 %588, %v453
    %v590 = vpop.permute.xlu0 %589
    %593 = vset.pattern.permute.xlu0 0
    %594 = vperm.xlu0 %593, %v454
    %v595 = vpop.permute.xlu0 %594
    %598 = vset.pattern.permute.xlu0 0
    %599 = vperm.xlu0 %598, %v455
    %v600 = vpop.permute.xlu0 %599
    %603 = vset.pattern.permute.xlu0 0
    %604 = vperm.xlu0 %603, %v456
    %v605 = vpop.permute.xlu0 %604
    %v607 = vmul.f32 %v37, %v530
    %v608 = vmul.f32 %v38, %v535
    %v609 = vmul.f32 %v39, %v540
    %v610 = vmul.f32 %v40, %v545
    %v611 = vmul.f32 %v41, %v550
    %v612 = vmul.f32 %v42, %v555
    %v613 = vmul.f32 %v43, %v560
    %v614 = vmul.f32 %v44, %v565
    %v615 = vmul.f32 %v45, %v570
    %v616 = vmul.f32 %v46, %v575
    %v617 = vmul.f32 %v47, %v580
    %v618 = vmul.f32 %v48, %v585
    %v619 = vmul.f32 %v49, %v590
    %v620 = vmul.f32 %v50, %v595
    %v621 = vmul.f32 %v51, %v600
    %v622 = vmul.f32 %v52, %v605
    %v623 = vmul.f32 %v511, %v607
    %v624 = vmul.f32 %v512, %v608
    %v625 = vmul.f32 %v513, %v609
    %v626 = vmul.f32 %v514, %v610
    %v627 = vmul.f32 %v515, %v611
    %v628 = vmul.f32 %v516, %v612
    %v629 = vmul.f32 %v517, %v613
    %v630 = vmul.f32 %v518, %v614
    %v631 = vmul.f32 %v519, %v615
    %v632 = vmul.f32 %v520, %v616
    %v633 = vmul.f32 %v521, %v617
    %v634 = vmul.f32 %v522, %v618
    %v635 = vmul.f32 %v523, %v619
    %v636 = vmul.f32 %v524, %v620
    %v637 = vmul.f32 %v525, %v621
    %v638 = vmul.f32 %v526, %v622
    %639 = vst [vmem:[#allocation5] sm:$0xff] %v623
    %640 = vst [vmem:[#allocation5 + $0x8] sm:$0xff] %v624
    %641 = vst [vmem:[#allocation5 + $0x10] sm:$0xff] %v625
    %642 = vst [vmem:[#allocation5 + $0x18] sm:$0xff] %v626
    %643 = vst [vmem:[#allocation5 + $0x20] sm:$0xff] %v627
    %644 = vst [vmem:[#allocation5 + $0x28] sm:$0xff] %v628
    %645 = vst [vmem:[#allocation5 + $0x30] sm:$0xff] %v629
    %646 = vst [vmem:[#allocation5 + $0x38] sm:$0xff] %v630
    %647 = vst [vmem:[#allocation5 + $0x40] sm:$0xff] %v631
    %648 = vst [vmem:[#allocation5 + $0x48] sm:$0xff] %v632
    %649 = vst [vmem:[#allocation5 + $0x50] sm:$0xff] %v633
    %650 = vst [vmem:[#allocation5 + $0x58] sm:$0xff] %v634
    %651 = vst [vmem:[#allocation5 + $0x60] sm:$0xff] %v635
    %652 = vst [vmem:[#allocation5 + $0x68] sm:$0xff] %v636
    %653 = vst [vmem:[#allocation5 + $0x70] sm:$0xff] %v637
    %654 = vst [vmem:[#allocation5 + $0x78] sm:$0xff] %v638
    // Predicated region
    $region26: #{tpu_custom_call.1} parent=1 // pred_check
      _
    $region27: #{tpu_custom_call.1} parent=1 // pred_check_branch
      %656 = sbr.rel (0) target = $region29
    $region28: #{tpu_custom_call.1} parent=1 // pred_region
      %658 = vsyncadd [#allocation4], 0
      %s659 = sshll.u32 [#allocation5], 4
      %s660 = int_to_ptr.vmem [resolvable:$true] %s659
      %s661 = sshll.u32 %s5, 4
      %s662 = int_to_ptr.hbm [resolvable:$true] %s661
      %667 = dma.vmem_to_hbm [thread:$0]  %s660, 2048, %s662, [#allocation4], 128, 128, 8
    $region29: #{tpu_custom_call.1} parent=1 // pred_fallthru
      _
    // Predicated region
    $region30: #{tpu_custom_call.1} parent=1 // pred_check
      _
    $region31: #{tpu_custom_call.1} parent=1 // pred_check_branch
      %669 = sbr.rel (0) target = $region33
    $region32: #{tpu_custom_call.1} parent=1 // pred_region
      %671 = dma.done [#allocation4], 2048
    $region33: #{tpu_custom_call.1} parent=1 // pred_fallthru
      _
    %672 = vsyncpa [#allocation3], 1
    %673 = vsyncpa [#allocation4], 1

</llo_original>
